<compile_context>
chip_gen: v7x
topology: tpu7x:2x2x1
jax: 0.10.0
libtpu: 0.0.40
codegen_flags: <defaults>
</compile_context>

<pallas_src>
import functools

import jax
import jax.numpy as jnp
from jax import lax
from jax.experimental import pallas as pl
from jax.experimental.pallas import tpu as pltpu


def _round_up(x, m):
    return (x + m - 1) // m * m


def _pad2d(a, rows, cols):
    if a.shape == (rows, cols):
        return a
    return jnp.zeros((rows, cols), a.dtype).at[:a.shape[0], :a.shape[1]].set(a)


def lstm_kernel(x_ref, w_ih_ref, w_hh_ref, b_ref, w_head_ref, b_head_ref,
                out_ref, gx_ref, *, T, H, packed):
    """Whole-sequence LSTM recurrence + collapsed affine head, single invocation.

    x_ref      : (T*Bp, Ep)   matmul dtype (f32/bf16), whole embedded sequence in VMEM
    w_ih_ref   : (Ep, NG)     matmul dtype   (NG = round_up(4H,128), gates [i|f|g|o])
    w_hh_ref   : (Hw, NG)     matmul dtype   (Hw = NG if packed else H)
    b_ref      : (1, NG)      f32  (b_ih + b_hh)
    w_head_ref : (Hw, Cp)     matmul dtype   (w1 @ w2 @ wf)
    b_head_ref : (1, Cp)      f32
    out_ref    : (Bp, Cp)     f32
    gx_ref     : (T*Bp, NG)   f32 VMEM scratch for the hoisted input projection
    """
    TB, _ = x_ref.shape
    Bp = TB // T
    NG = w_ih_ref.shape[1]
    Hw = NG if packed else H
    mm_dtype = w_ih_ref.dtype

    # (1) Input projection hoisted off the serial chain: one (T*Bp, Ep)@(Ep, NG) MXU push
    #     with the bias folded in, written once to VMEM scratch.
    gx_ref[...] = (jnp.dot(x_ref[...], w_ih_ref[...],
                           preferred_element_type=jnp.float32) + b_ref[...])

    w_hh = w_hh_ref[...]  # resident across the unrolled time loop

    if packed:
        # Lane mask selecting the g (cell-candidate) block; hoisted so no per-step
        # broadcast_in_dim lands inside the unrolled loop.
        lane = lax.broadcasted_iota(jnp.int32, (Bp, NG), 1)
        g_mask = (lane >= 2 * H) & (lane < 3 * H)

    def step(t, carry):
        h, c = carry                                    # (Bp, Hw) f32 each
        row = pl.multiple_of(t * Bp, Bp)                # sublane-aligned dynamic row base
        z = gx_ref[pl.ds(row, Bp), :] + jnp.dot(
            h.astype(mm_dtype), w_hh, preferred_element_type=jnp.float32)  # (Bp, NG)
        if packed:
            # One sigmoid + one tanh over the packed gate vreg; select g via lane mask,
            # align f/g/o to the h/c lanes with XLU rotations (free relative to EUP/VPU).
            sg = jax.nn.sigmoid(z)
            th = jnp.tanh(z)
            act = jnp.where(g_mask, th, sg)             # [i|f|g|o] activations, packed
            f_g = pltpu.roll(act, shift=NG - H, axis=1)
            g_g = pltpu.roll(act, shift=NG - 2 * H, axis=1)
            o_g = pltpu.roll(act, shift=NG - 3 * H, axis=1)
            # Only lanes [0, H) of c/h are meaningful; garbage lanes are killed by the
            # zero rows [H, NG) of w_hh / w_head, so the recurrence stays exact.
            c_new = f_g * c + act * g_g
            h_new = o_g * jnp.tanh(c_new)
        else:
            # H is a lane multiple: per-gate slices are vreg-aligned, no rolls needed.
            i_g = jax.nn.sigmoid(z[:, 0 * H:1 * H])
            f_g = jax.nn.sigmoid(z[:, 1 * H:2 * H])
            g_g = jnp.tanh(z[:, 2 * H:3 * H])
            o_g = jax.nn.sigmoid(z[:, 3 * H:4 * H])
            c_new = f_g * c + i_g * g_g
            h_new = o_g * jnp.tanh(c_new)
        return h_new, c_new

    h0 = jnp.zeros((Bp, Hw), jnp.float32)
    c0 = jnp.zeros((Bp, Hw), jnp.float32)
    # Partial unroll: full LLO visibility for small T without blowing the 64-vreg file
    # at large T.
    h_T, _ = lax.fori_loop(0, T, step, (h0, c0), unroll=min(T, 8))

    # Collapsed fc head: one MXU push instead of three serial ones.
    out_ref[...] = (jnp.dot(h_T.astype(mm_dtype), w_head_ref[...],
                            preferred_element_type=jnp.float32) + b_head_ref[...])


@functools.partial(jax.jit, static_argnames=("matmul_dtype",))
def lstm_forward(seq, params, matmul_dtype=jnp.bfloat16):
    emb = params["embedding"]                       # (V, E)
    x = jnp.take(emb, seq, axis=0)                  # (T, B, E) embedding gather (glue)
    # TODO(synk): move the embedding gather in-kernel (PrefetchScalarGridSpec with
    # num_scalar_prefetch=1 + pl.Element row gather) to avoid the HBM round trip of x.
    T, B, E = x.shape
    H = params["w_hh"].shape[0]                     # w_hh: (H, 4H)
    C = params["wf"].shape[1]

    Bp = _round_up(B, 8)                            # sublane multiple
    Ep = _round_up(E, 128)                          # lane multiple
    Cp = _round_up(C, 128)                          # lane-dense output store
    NG = _round_up(4 * H, 128)                      # packed gate width
    packed = (H % 128 != 0)                         # small H -> packed gates + rolls
    Hw = NG if packed else H                        # h/c width == K dim of w_hh / w_head

    # Pad activations only when needed. Zero padding is inert: padded gate lanes are 0,
    # and the zero rows of w_hh / w_head kill any padded/garbage hidden lanes.
    if (B, E) == (Bp, Ep):
        x_p = x
    else:
        x_p = jnp.zeros((T, Bp, Ep), x.dtype).at[:, :B, :E].set(x)
    x_p = x_p.reshape(T * Bp, Ep).astype(matmul_dtype)

    b = (params["b_ih"] + params["b_hh"]).reshape(1, 4 * H)
    # Collapse the affine chain linear1 -> linear2 -> fc into one matmul.
    w_head = params["w1"] @ params["w2"] @ params["wf"]                       # (H, C)
    b_head = ((params["b1"] @ params["w2"] + params["b2"]) @ params["wf"]
              + params["bf"]).reshape(1, C)

    w_ih_p = _pad2d(params["w_ih"], Ep, NG).astype(matmul_dtype)
    w_hh_p = _pad2d(params["w_hh"], Hw, NG).astype(matmul_dtype)
    b_p = _pad2d(b, 1, NG)                                                    # f32
    w_head_p = _pad2d(w_head, Hw, Cp).astype(matmul_dtype)
    b_head_p = _pad2d(b_head, 1, Cp)                                          # f32

    # No grid -> nothing to pipeline: whole-array VMEM residency, no double-buffering.
    vmem = pl.BlockSpec(memory_space=pltpu.MemorySpace.VMEM)

    bytes_in = sum(int(a.size) * a.dtype.itemsize
                   for a in (x_p, w_ih_p, w_hh_p, b_p, w_head_p, b_head_p))
    bytes_scratch = T * Bp * NG * 4
    vmem_limit = int(min(max(2 * (bytes_in + bytes_scratch), 32 * 1024 * 1024),
                         60 * 1024 * 1024))
    # TODO(synk): for long sequences that exceed the VMEM budget (esp. v7x's 64 MiB),
    # tile T via a grid axis with h/c carried in VMEM scratch across steps, and on v7x
    # split Bp across the two TensorCores with a leading "parallel" grid axis.

    out_p = pl.pallas_call(
        functools.partial(lstm_kernel, T=T, H=H, packed=packed),
        out_shape=jax.ShapeDtypeStruct((Bp, Cp), jnp.float32),
        in_specs=[vmem] * 6,
        out_specs=vmem,
        scratch_shapes=[pltpu.VMEM((T * Bp, NG), jnp.float32)],
        compiler_params=pltpu.CompilerParams(vmem_limit_bytes=vmem_limit),
    )(x_p, w_ih_p, w_hh_p, b_p, w_head_p, b_head_p)

    return out_p[:B, :C]


def make_params(key, vocab_size, hidden_dim, embedding_dim, num_classes):
    ks = jax.random.split(key, 12)
    s = 0.1
    H, E, C = hidden_dim, embedding_dim, num_classes
    return {
        "embedding": jax.random.normal(ks[0], (vocab_size, E), jnp.float32) * s,
        # stored transposed relative to PyTorch (out,in) -> (in,out)
        "w_ih": jax.random.normal(ks[1], (E, 4 * H), jnp.float32) * s,
        "w_hh": jax.random.normal(ks[2], (H, 4 * H), jnp.float32) * s,
        "b_ih": jax.random.normal(ks[3], (4 * H,), jnp.float32) * s,
        "b_hh": jax.random.normal(ks[4], (4 * H,), jnp.float32) * s,
        "w1": jax.random.normal(ks[5], (H, H), jnp.float32) * s,
        "b1": jax.random.normal(ks[6], (H,), jnp.float32) * s,
        "w2": jax.random.normal(ks[7], (H, H), jnp.float32) * s,
        "b2": jax.random.normal(ks[8], (H,), jnp.float32) * s,
        "wf": jax.random.normal(ks[9], (H, C), jnp.float32) * s,
        "bf": jax.random.normal(ks[10], (C,), jnp.float32) * s,
    }


def reference_forward(seq, params):
    """Pure-JAX reference matching PyTorch semantics."""
    x = jnp.take(params["embedding"], seq, axis=0)          # (T, B, E)
    H = params["w_hh"].shape[0]
    B = x.shape[1]
    b = params["b_ih"] + params["b_hh"]

    def step(carry, x_t):
        h, c = carry
        gates = x_t @ params["w_ih"] + h @ params["w_hh"] + b
        i = jax.nn.sigmoid(gates[:, 0 * H:1 * H])
        f = jax.nn.sigmoid(gates[:, 1 * H:2 * H])
        g = jnp.tanh(gates[:, 2 * H:3 * H])
        o = jax.nn.sigmoid(gates[:, 3 * H:4 * H])
        c = f * c + i * g
        h = o * jnp.tanh(c)
        return (h, c), None

    h0 = jnp.zeros((B, H), jnp.float32)
    (h, _), _ = jax.lax.scan(step, (h0, h0), x)
    out = h @ params["w1"] + params["b1"]
    out = out @ params["w2"] + params["b2"]
    out = out @ params["wf"] + params["bf"]
    return out


if __name__ == "__main__":
    # small shapes: vocab=100, T=8, B=4, E=128, H=32, num_classes=6
    VOCAB, T, B, E, H, C = 100, 8, 4, 128, 32, 6

    key = jax.random.PRNGKey(0)
    kp, ks = jax.random.split(key)
    params = make_params(kp, VOCAB, H, E, C)
    seq = jax.random.randint(ks, (T, B), 0, VOCAB, dtype=jnp.int32)

    ref = reference_forward(seq, params)

    # f32 matmul-operand path (exact-match validation).
    out_f32 = jax.block_until_ready(lstm_forward(seq, params, matmul_dtype=jnp.float32))
    assert out_f32.shape == (B, C)
    assert jnp.allclose(out_f32, ref, rtol=1e-4, atol=1e-4), "f32 mismatch vs reference"

    # bf16 matmul-operand path (default; f32 MXU accumulation, f32 elementwise).
    out_bf16 = jax.block_until_ready(lstm_forward(seq, params, matmul_dtype=jnp.bfloat16))
    assert jnp.allclose(out_bf16, ref, rtol=5e-2, atol=5e-2), "bf16 mismatch vs reference"

    print("KERNEL_OK")
</pallas_src>

<mosaic_0001>
module attributes {stable_mosaic.version = 11 : i64} {
  func.func @lstm_kernel(%arg0: memref<64x128xf32, #tpu.memory_space<vmem>>, %arg1: memref<128x128xf32, #tpu.memory_space<vmem>>, %arg2: memref<128x128xf32, #tpu.memory_space<vmem>>, %arg3: memref<1x128xf32, #tpu.memory_space<vmem>>, %arg4: memref<128x128xf32, #tpu.memory_space<vmem>>, %arg5: memref<1x128xf32, #tpu.memory_space<vmem>>, %arg6: memref<8x128xf32, #tpu.memory_space<vmem>>, %arg7: memref<64x128xf32, #tpu.memory_space<vmem>>) attributes {dimension_semantics = [], scalar_prefetch = 0 : i64, scratch_operands = 1 : i64, tpu.core_type = #tpu.core_type<tc>} {
    %c0 = arith.constant 0 : index
    %c0_0 = arith.constant 0 : index
    %0 = vector.load %arg0[%c0, %c0_0] : memref<64x128xf32, #tpu.memory_space<vmem>>, vector<64x128xf32>
    %c0_1 = arith.constant 0 : index
    %c0_2 = arith.constant 0 : index
    %1 = vector.load %arg1[%c0_1, %c0_2] : memref<128x128xf32, #tpu.memory_space<vmem>>, vector<128x128xf32>
    %cst = arith.constant dense<0.000000e+00> : vector<64x128xf32>
    %2 = tpu.matmul %0, %1, %cst {dimension_numbers = #tpu.dot_dimension_numbers<[1], [0], [0], [1], [0, 0, 1, 1], [], []>} : vector<64x128xf32>, vector<128x128xf32>, vector<64x128xf32> -> vector<64x128xf32>
    %c0_3 = arith.constant 0 : index
    %c0_4 = arith.constant 0 : index
    %3 = vector.load %arg3[%c0_3, %c0_4] : memref<1x128xf32, #tpu.memory_space<vmem>>, vector<1x128xf32>
    %4 = vector.broadcast %3 : vector<1x128xf32> to vector<64x128xf32>
    %5 = arith.addf %2, %4 : vector<64x128xf32>
    %c0_5 = arith.constant 0 : index
    %c0_6 = arith.constant 0 : index
    %6 = vector.load %arg7[%c0_5, %c0_6] : memref<64x128xf32, #tpu.memory_space<vmem>>, vector<64x128xf32>
    tpu.vector_store %arg7[%c0_5, %c0_6], %5 {strides = array<i32>} : memref<64x128xf32, #tpu.memory_space<vmem>>, vector<64x128xf32>,
    %c0_7 = arith.constant 0 : index
    %c0_8 = arith.constant 0 : index
    %7 = vector.load %arg2[%c0_7, %c0_8] : memref<128x128xf32, #tpu.memory_space<vmem>>, vector<128x128xf32>
    %8 = tpu.iota {dimensions = array<i32: 1>} : vector<8x128xi32>
    %c64_i32 = arith.constant 64 : i32
    %9 = vector.broadcast %c64_i32 : i32 to vector<8x128xi32>
    %10 = arith.cmpi sge, %8, %9 : vector<8x128xi32>
    %c96_i32 = arith.constant 96 : i32
    %11 = vector.broadcast %c96_i32 : i32 to vector<8x128xi32>
    %12 = arith.cmpi slt, %8, %11 : vector<8x128xi32>
    %13 = arith.andi %10, %12 : vector<8x128xi1>
    %cst_9 = arith.constant 0.000000e+00 : f32
    %14 = vector.broadcast %cst_9 : f32 to vector<8x128xf32>
    %cst_10 = arith.constant 0.000000e+00 : f32
    %15 = vector.broadcast %cst_10 : f32 to vector<8x128xf32>
    %c0_i32 = arith.constant 0 : i32
    %c8_i32 = arith.constant 8 : i32
    %16 = arith.muli %c0_i32, %c8_i32 : i32
    %17 = tpu.assume_multiple %16, 8 : i32
    %18 = arith.index_cast %17 : i32 to index
    %c0_11 = arith.constant 0 : index
    %19 = vector.load %arg7[%18, %c0_11] : memref<64x128xf32, #tpu.memory_space<vmem>>, vector<8x128xf32>
    %cst_12 = arith.constant dense<0.000000e+00> : vector<8x128xf32>
    %20 = tpu.matmul %14, %7, %cst_12 {dimension_numbers = #tpu.dot_dimension_numbers<[1], [0], [0], [1], [0, 0, 1, 1], [], []>} : vector<8x128xf32>, vector<128x128xf32>, vector<8x128xf32> -> vector<8x128xf32>
    %21 = arith.addf %19, %20 : vector<8x128xf32>
    %22 = arith.negf %21 : vector<8x128xf32>
    %23 = math.exp %22 : vector<8x128xf32>
    %cst_13 = arith.constant 1.000000e+00 : f32
    %24 = vector.broadcast %cst_13 : f32 to vector<8x128xf32>
    %25 = arith.addf %24, %23 : vector<8x128xf32>
    %26 = arith.divf %24, %25 : vector<8x128xf32>
    %27 = math.tanh %21 : vector<8x128xf32>
    %28 = arith.select %13, %27, %26 : vector<8x128xi1>, vector<8x128xf32>
    %c96_i32_14 = arith.constant 96 : i32
    %29 = tpu.dynamic_rotate %28 by %c96_i32_14 dim 1 : vector<8x128xf32>, i32 -> vector<8x128xf32>
    %c64_i32_15 = arith.constant 64 : i32
    %30 = tpu.dynamic_rotate %28 by %c64_i32_15 dim 1 : vector<8x128xf32>, i32 -> vector<8x128xf32>
    %c32_i32 = arith.constant 32 : i32
    %31 = tpu.dynamic_rotate %28 by %c32_i32 dim 1 : vector<8x128xf32>, i32 -> vector<8x128xf32>
    %32 = arith.mulf %29, %15 : vector<8x128xf32>
    %33 = arith.mulf %28, %30 : vector<8x128xf32>
    %34 = arith.addf %32, %33 : vector<8x128xf32>
    %35 = math.tanh %34 : vector<8x128xf32>
    %36 = arith.mulf %31, %35 : vector<8x128xf32>
    %c1_i32 = arith.constant 1 : i32
    %c8_i32_16 = arith.constant 8 : i32
    %37 = arith.muli %c1_i32, %c8_i32_16 : i32
    %38 = tpu.assume_multiple %37, 8 : i32
    %39 = arith.index_cast %38 : i32 to index
    %c0_17 = arith.constant 0 : index
    %40 = vector.load %arg7[%39, %c0_17] : memref<64x128xf32, #tpu.memory_space<vmem>>, vector<8x128xf32>
    %cst_18 = arith.constant dense<0.000000e+00> : vector<8x128xf32>
    %41 = tpu.matmul %36, %7, %cst_18 {dimension_numbers = #tpu.dot_dimension_numbers<[1], [0], [0], [1], [0, 0, 1, 1], [], []>} : vector<8x128xf32>, vector<128x128xf32>, vector<8x128xf32> -> vector<8x128xf32>
    %42 = arith.addf %40, %41 : vector<8x128xf32>
    %43 = arith.negf %42 : vector<8x128xf32>
    %44 = math.exp %43 : vector<8x128xf32>
    %cst_19 = arith.constant 1.000000e+00 : f32
    %45 = vector.broadcast %cst_19 : f32 to vector<8x128xf32>
    %46 = arith.addf %45, %44 : vector<8x128xf32>
    %47 = arith.divf %45, %46 : vector<8x128xf32>
    %48 = math.tanh %42 : vector<8x128xf32>
    %49 = arith.select %13, %48, %47 : vector<8x128xi1>, vector<8x128xf32>
    %c96_i32_20 = arith.constant 96 : i32
    %50 = tpu.dynamic_rotate %49 by %c96_i32_20 dim 1 : vector<8x128xf32>, i32 -> vector<8x128xf32>
    %c64_i32_21 = arith.constant 64 : i32
    %51 = tpu.dynamic_rotate %49 by %c64_i32_21 dim 1 : vector<8x128xf32>, i32 -> vector<8x128xf32>
    %c32_i32_22 = arith.constant 32 : i32
    %52 = tpu.dynamic_rotate %49 by %c32_i32_22 dim 1 : vector<8x128xf32>, i32 -> vector<8x128xf32>
    %53 = arith.mulf %50, %34 : vector<8x128xf32>
    %54 = arith.mulf %49, %51 : vector<8x128xf32>
    %55 = arith.addf %53, %54 : vector<8x128xf32>
    %56 = math.tanh %55 : vector<8x128xf32>
    %57 = arith.mulf %52, %56 : vector<8x128xf32>
    %c2_i32 = arith.constant 2 : i32
    %c8_i32_23 = arith.constant 8 : i32
    %58 = arith.muli %c2_i32, %c8_i32_23 : i32
    %59 = tpu.assume_multiple %58, 8 : i32
    %60 = arith.index_cast %59 : i32 to index
    %c0_24 = arith.constant 0 : index
    %61 = vector.load %arg7[%60, %c0_24] : memref<64x128xf32, #tpu.memory_space<vmem>>, vector<8x128xf32>
    %cst_25 = arith.constant dense<0.000000e+00> : vector<8x128xf32>
    %62 = tpu.matmul %57, %7, %cst_25 {dimension_numbers = #tpu.dot_dimension_numbers<[1], [0], [0], [1], [0, 0, 1, 1], [], []>} : vector<8x128xf32>, vector<128x128xf32>, vector<8x128xf32> -> vector<8x128xf32>
    %63 = arith.addf %61, %62 : vector<8x128xf32>
    %64 = arith.negf %63 : vector<8x128xf32>
    %65 = math.exp %64 : vector<8x128xf32>
    %cst_26 = arith.constant 1.000000e+00 : f32
    %66 = vector.broadcast %cst_26 : f32 to vector<8x128xf32>
    %67 = arith.addf %66, %65 : vector<8x128xf32>
    %68 = arith.divf %66, %67 : vector<8x128xf32>
    %69 = math.tanh %63 : vector<8x128xf32>
    %70 = arith.select %13, %69, %68 : vector<8x128xi1>, vector<8x128xf32>
    %c96_i32_27 = arith.constant 96 : i32
    %71 = tpu.dynamic_rotate %70 by %c96_i32_27 dim 1 : vector<8x128xf32>, i32 -> vector<8x128xf32>
    %c64_i32_28 = arith.constant 64 : i32
    %72 = tpu.dynamic_rotate %70 by %c64_i32_28 dim 1 : vector<8x128xf32>, i32 -> vector<8x128xf32>
    %c32_i32_29 = arith.constant 32 : i32
    %73 = tpu.dynamic_rotate %70 by %c32_i32_29 dim 1 : vector<8x128xf32>, i32 -> vector<8x128xf32>
    %74 = arith.mulf %71, %55 : vector<8x128xf32>
    %75 = arith.mulf %70, %72 : vector<8x128xf32>
    %76 = arith.addf %74, %75 : vector<8x128xf32>
    %77 = math.tanh %76 : vector<8x128xf32>
    %78 = arith.mulf %73, %77 : vector<8x128xf32>
    %c3_i32 = arith.constant 3 : i32
    %c8_i32_30 = arith.constant 8 : i32
    %79 = arith.muli %c3_i32, %c8_i32_30 : i32
    %80 = tpu.assume_multiple %79, 8 : i32
    %81 = arith.index_cast %80 : i32 to index
    %c0_31 = arith.constant 0 : index
    %82 = vector.load %arg7[%81, %c0_31] : memref<64x128xf32, #tpu.memory_space<vmem>>, vector<8x128xf32>
    %cst_32 = arith.constant dense<0.000000e+00> : vector<8x128xf32>
    %83 = tpu.matmul %78, %7, %cst_32 {dimension_numbers = #tpu.dot_dimension_numbers<[1], [0], [0], [1], [0, 0, 1, 1], [], []>} : vector<8x128xf32>, vector<128x128xf32>, vector<8x128xf32> -> vector<8x128xf32>
    %84 = arith.addf %82, %83 : vector<8x128xf32>
    %85 = arith.negf %84 : vector<8x128xf32>
    %86 = math.exp %85 : vector<8x128xf32>
    %cst_33 = arith.constant 1.000000e+00 : f32
    %87 = vector.broadcast %cst_33 : f32 to vector<8x128xf32>
    %88 = arith.addf %87, %86 : vector<8x128xf32>
    %89 = arith.divf %87, %88 : vector<8x128xf32>
    %90 = math.tanh %84 : vector<8x128xf32>
    %91 = arith.select %13, %90, %89 : vector<8x128xi1>, vector<8x128xf32>
    %c96_i32_34 = arith.constant 96 : i32
    %92 = tpu.dynamic_rotate %91 by %c96_i32_34 dim 1 : vector<8x128xf32>, i32 -> vector<8x128xf32>
    %c64_i32_35 = arith.constant 64 : i32
    %93 = tpu.dynamic_rotate %91 by %c64_i32_35 dim 1 : vector<8x128xf32>, i32 -> vector<8x128xf32>
    %c32_i32_36 = arith.constant 32 : i32
    %94 = tpu.dynamic_rotate %91 by %c32_i32_36 dim 1 : vector<8x128xf32>, i32 -> vector<8x128xf32>
    %95 = arith.mulf %92, %76 : vector<8x128xf32>
    %96 = arith.mulf %91, %93 : vector<8x128xf32>
    %97 = arith.addf %95, %96 : vector<8x128xf32>
    %98 = math.tanh %97 : vector<8x128xf32>
    %99 = arith.mulf %94, %98 : vector<8x128xf32>
    %c4_i32 = arith.constant 4 : i32
    %c8_i32_37 = arith.constant 8 : i32
    %100 = arith.muli %c4_i32, %c8_i32_37 : i32
    %101 = tpu.assume_multiple %100, 8 : i32
    %102 = arith.index_cast %101 : i32 to index
    %c0_38 = arith.constant 0 : index
    %103 = vector.load %arg7[%102, %c0_38] : memref<64x128xf32, #tpu.memory_space<vmem>>, vector<8x128xf32>
    %cst_39 = arith.constant dense<0.000000e+00> : vector<8x128xf32>
    %104 = tpu.matmul %99, %7, %cst_39 {dimension_numbers = #tpu.dot_dimension_numbers<[1], [0], [0], [1], [0, 0, 1, 1], [], []>} : vector<8x128xf32>, vector<128x128xf32>, vector<8x128xf32> -> vector<8x128xf32>
    %105 = arith.addf %103, %104 : vector<8x128xf32>
    %106 = arith.negf %105 : vector<8x128xf32>
    %107 = math.exp %106 : vector<8x128xf32>
    %cst_40 = arith.constant 1.000000e+00 : f32
    %108 = vector.broadcast %cst_40 : f32 to vector<8x128xf32>
    %109 = arith.addf %108, %107 : vector<8x128xf32>
    %110 = arith.divf %108, %109 : vector<8x128xf32>
    %111 = math.tanh %105 : vector<8x128xf32>
    %112 = arith.select %13, %111, %110 : vector<8x128xi1>, vector<8x128xf32>
    %c96_i32_41 = arith.constant 96 : i32
    %113 = tpu.dynamic_rotate %112 by %c96_i32_41 dim 1 : vector<8x128xf32>, i32 -> vector<8x128xf32>
    %c64_i32_42 = arith.constant 64 : i32
    %114 = tpu.dynamic_rotate %112 by %c64_i32_42 dim 1 : vector<8x128xf32>, i32 -> vector<8x128xf32>
    %c32_i32_43 = arith.constant 32 : i32
    %115 = tpu.dynamic_rotate %112 by %c32_i32_43 dim 1 : vector<8x128xf32>, i32 -> vector<8x128xf32>
    %116 = arith.mulf %113, %97 : vector<8x128xf32>
    %117 = arith.mulf %112, %114 : vector<8x128xf32>
    %118 = arith.addf %116, %117 : vector<8x128xf32>
    %119 = math.tanh %118 : vector<8x128xf32>
    %120 = arith.mulf %115, %119 : vector<8x128xf32>
    %c5_i32 = arith.constant 5 : i32
    %c8_i32_44 = arith.constant 8 : i32
    %121 = arith.muli %c5_i32, %c8_i32_44 : i32
    %122 = tpu.assume_multiple %121, 8 : i32
    %123 = arith.index_cast %122 : i32 to index
    %c0_45 = arith.constant 0 : index
    %124 = vector.load %arg7[%123, %c0_45] : memref<64x128xf32, #tpu.memory_space<vmem>>, vector<8x128xf32>
    %cst_46 = arith.constant dense<0.000000e+00> : vector<8x128xf32>
    %125 = tpu.matmul %120, %7, %cst_46 {dimension_numbers = #tpu.dot_dimension_numbers<[1], [0], [0], [1], [0, 0, 1, 1], [], []>} : vector<8x128xf32>, vector<128x128xf32>, vector<8x128xf32> -> vector<8x128xf32>
    %126 = arith.addf %124, %125 : vector<8x128xf32>
    %127 = arith.negf %126 : vector<8x128xf32>
    %128 = math.exp %127 : vector<8x128xf32>
    %cst_47 = arith.constant 1.000000e+00 : f32
    %129 = vector.broadcast %cst_47 : f32 to vector<8x128xf32>
    %130 = arith.addf %129, %128 : vector<8x128xf32>
    %131 = arith.divf %129, %130 : vector<8x128xf32>
    %132 = math.tanh %126 : vector<8x128xf32>
    %133 = arith.select %13, %132, %131 : vector<8x128xi1>, vector<8x128xf32>
    %c96_i32_48 = arith.constant 96 : i32
    %134 = tpu.dynamic_rotate %133 by %c96_i32_48 dim 1 : vector<8x128xf32>, i32 -> vector<8x128xf32>
    %c64_i32_49 = arith.constant 64 : i32
    %135 = tpu.dynamic_rotate %133 by %c64_i32_49 dim 1 : vector<8x128xf32>, i32 -> vector<8x128xf32>
    %c32_i32_50 = arith.constant 32 : i32
    %136 = tpu.dynamic_rotate %133 by %c32_i32_50 dim 1 : vector<8x128xf32>, i32 -> vector<8x128xf32>
    %137 = arith.mulf %134, %118 : vector<8x128xf32>
    %138 = arith.mulf %133, %135 : vector<8x128xf32>
    %139 = arith.addf %137, %138 : vector<8x128xf32>
    %140 = math.tanh %139 : vector<8x128xf32>
    %141 = arith.mulf %136, %140 : vector<8x128xf32>
    %c6_i32 = arith.constant 6 : i32
    %c8_i32_51 = arith.constant 8 : i32
    %142 = arith.muli %c6_i32, %c8_i32_51 : i32
    %143 = tpu.assume_multiple %142, 8 : i32
    %144 = arith.index_cast %143 : i32 to index
    %c0_52 = arith.constant 0 : index
    %145 = vector.load %arg7[%144, %c0_52] : memref<64x128xf32, #tpu.memory_space<vmem>>, vector<8x128xf32>
    %cst_53 = arith.constant dense<0.000000e+00> : vector<8x128xf32>
    %146 = tpu.matmul %141, %7, %cst_53 {dimension_numbers = #tpu.dot_dimension_numbers<[1], [0], [0], [1], [0, 0, 1, 1], [], []>} : vector<8x128xf32>, vector<128x128xf32>, vector<8x128xf32> -> vector<8x128xf32>
    %147 = arith.addf %145, %146 : vector<8x128xf32>
    %148 = arith.negf %147 : vector<8x128xf32>
    %149 = math.exp %148 : vector<8x128xf32>
    %cst_54 = arith.constant 1.000000e+00 : f32
    %150 = vector.broadcast %cst_54 : f32 to vector<8x128xf32>
    %151 = arith.addf %150, %149 : vector<8x128xf32>
    %152 = arith.divf %150, %151 : vector<8x128xf32>
    %153 = math.tanh %147 : vector<8x128xf32>
    %154 = arith.select %13, %153, %152 : vector<8x128xi1>, vector<8x128xf32>
    %c96_i32_55 = arith.constant 96 : i32
    %155 = tpu.dynamic_rotate %154 by %c96_i32_55 dim 1 : vector<8x128xf32>, i32 -> vector<8x128xf32>
    %c64_i32_56 = arith.constant 64 : i32
    %156 = tpu.dynamic_rotate %154 by %c64_i32_56 dim 1 : vector<8x128xf32>, i32 -> vector<8x128xf32>
    %c32_i32_57 = arith.constant 32 : i32
    %157 = tpu.dynamic_rotate %154 by %c32_i32_57 dim 1 : vector<8x128xf32>, i32 -> vector<8x128xf32>
    %158 = arith.mulf %155, %139 : vector<8x128xf32>
    %159 = arith.mulf %154, %156 : vector<8x128xf32>
    %160 = arith.addf %158, %159 : vector<8x128xf32>
    %161 = math.tanh %160 : vector<8x128xf32>
    %162 = arith.mulf %157, %161 : vector<8x128xf32>
    %c7_i32 = arith.constant 7 : i32
    %c8_i32_58 = arith.constant 8 : i32
    %163 = arith.muli %c7_i32, %c8_i32_58 : i32
    %164 = tpu.assume_multiple %163, 8 : i32
    %165 = arith.index_cast %164 : i32 to index
    %c0_59 = arith.constant 0 : index
    %166 = vector.load %arg7[%165, %c0_59] : memref<64x128xf32, #tpu.memory_space<vmem>>, vector<8x128xf32>
    %cst_60 = arith.constant dense<0.000000e+00> : vector<8x128xf32>
    %167 = tpu.matmul %162, %7, %cst_60 {dimension_numbers = #tpu.dot_dimension_numbers<[1], [0], [0], [1], [0, 0, 1, 1], [], []>} : vector<8x128xf32>, vector<128x128xf32>, vector<8x128xf32> -> vector<8x128xf32>
    %168 = arith.addf %166, %167 : vector<8x128xf32>
    %169 = arith.negf %168 : vector<8x128xf32>
    %170 = math.exp %169 : vector<8x128xf32>
    %cst_61 = arith.constant 1.000000e+00 : f32
    %171 = vector.broadcast %cst_61 : f32 to vector<8x128xf32>
    %172 = arith.addf %171, %170 : vector<8x128xf32>
    %173 = arith.divf %171, %172 : vector<8x128xf32>
    %174 = math.tanh %168 : vector<8x128xf32>
    %175 = arith.select %13, %174, %173 : vector<8x128xi1>, vector<8x128xf32>
    %c96_i32_62 = arith.constant 96 : i32
    %176 = tpu.dynamic_rotate %175 by %c96_i32_62 dim 1 : vector<8x128xf32>, i32 -> vector<8x128xf32>
    %c64_i32_63 = arith.constant 64 : i32
    %177 = tpu.dynamic_rotate %175 by %c64_i32_63 dim 1 : vector<8x128xf32>, i32 -> vector<8x128xf32>
    %c32_i32_64 = arith.constant 32 : i32
    %178 = tpu.dynamic_rotate %175 by %c32_i32_64 dim 1 : vector<8x128xf32>, i32 -> vector<8x128xf32>
    %179 = arith.mulf %176, %160 : vector<8x128xf32>
    %180 = arith.mulf %175, %177 : vector<8x128xf32>
    %181 = arith.addf %179, %180 : vector<8x128xf32>
    %182 = math.tanh %181 : vector<8x128xf32>
    %183 = arith.mulf %178, %182 : vector<8x128xf32>
    %c8_i32_65 = arith.constant 8 : i32
    %c0_66 = arith.constant 0 : index
    %c0_67 = arith.constant 0 : index
    %184 = vector.load %arg4[%c0_66, %c0_67] : memref<128x128xf32, #tpu.memory_space<vmem>>, vector<128x128xf32>
    %cst_68 = arith.constant dense<0.000000e+00> : vector<8x128xf32>
    %185 = tpu.matmul %183, %184, %cst_68 {dimension_numbers = #tpu.dot_dimension_numbers<[1], [0], [0], [1], [0, 0, 1, 1], [], []>} : vector<8x128xf32>, vector<128x128xf32>, vector<8x128xf32> -> vector<8x128xf32>
    %c0_69 = arith.constant 0 : index
    %c0_70 = arith.constant 0 : index
    %186 = vector.load %arg5[%c0_69, %c0_70] : memref<1x128xf32, #tpu.memory_space<vmem>>, vector<1x128xf32>
    %187 = vector.broadcast %186 : vector<1x128xf32> to vector<8x128xf32>
    %188 = arith.addf %185, %187 : vector<8x128xf32>
    %c0_71 = arith.constant 0 : index
    %c0_72 = arith.constant 0 : index
    %189 = vector.load %arg6[%c0_71, %c0_72] : memref<8x128xf32, #tpu.memory_space<vmem>>, vector<8x128xf32>
    tpu.vector_store %arg6[%c0_71, %c0_72], %188 {strides = array<i32>} : memref<8x128xf32, #tpu.memory_space<vmem>>, vector<8x128xf32>,
    return
  }
}

</mosaic_0001>

<llo_original>
// kernel: lstm_forward.1
$region0: #{lstm_forward.1}
  #allocation0 [shape = 'u32[]', space=smem, size = 0x4, offset = 0x4, fixed_abs, tag = 'smem constant byte address 0x4 - core index']
  #allocation1 [shape = 'u32[144,128]{1,0:T(1,128)}', space=vmem, size = 0x12000, scoped, tag = 'internal scratch']
  #allocation2 [shape = 'f32[64,128]{1,0:T(8,128)}', space=vmem, size = 0x8000, scoped, tag = 'scratch operand']
  %s0 = inlined_call_operand.vmem [shape: f32[64,128], index: 0, kind: input, shape index: {}]
  %s1 = inlined_call_operand.vmem [shape: f32[128,128], index: 1, kind: input, shape index: {}]
  %s2 = inlined_call_operand.vmem [shape: f32[128,128], index: 2, kind: input, shape index: {}]
  %s3 = inlined_call_operand.vmem [shape: f32[1,128], index: 3, kind: input, shape index: {}]
  %s4 = inlined_call_operand.vmem [shape: f32[128,128], index: 4, kind: input, shape index: {}]
  %s5 = inlined_call_operand.vmem [shape: f32[1,128], index: 5, kind: input, shape index: {}]
  %s6 = inlined_call_operand.vmem [shape: f32[8,128], index: 6, kind: output, shape index: {}]
  %s7 = sld [smem:[#allocation0]]
  $region34: #{lstm_forward.1} parent=0
    _
  %s9 = ssub.s32 1, %s7
  %s10 = scalar_select 0, %s9, %s7
  // Predicated region
  $region2: #{lstm_forward.1} parent=0 // pred_check
    _
  $region3: #{lstm_forward.1} parent=0 // pred_check_branch
    %12 = sbr.rel (0) target = $region5
  $region4: #{lstm_forward.1} parent=0 // pred_region
    _
  $region5: #{lstm_forward.1} parent=0 // pred_fallthru
    _
  // Predicated region
  $region6: #{lstm_forward.1} parent=0 // pred_check
    _
  $region7: #{lstm_forward.1} parent=0 // pred_check_branch
    %14 = sbr.rel (0) target = $region9
  $region8: #{lstm_forward.1} parent=0 // pred_region
    _
  $region9: #{lstm_forward.1} parent=0 // pred_fallthru
    _
  // Predicated region
  $region10: #{lstm_forward.1} parent=0 // pred_check
    _
  $region11: #{lstm_forward.1} parent=0 // pred_check_branch
    %16 = sbr.rel (0) target = $region13
  $region12: #{lstm_forward.1} parent=0 // pred_region
    _
  $region13: #{lstm_forward.1} parent=0 // pred_fallthru
    _
  // Predicated region
  $region14: #{lstm_forward.1} parent=0 // pred_check
    _
  $region15: #{lstm_forward.1} parent=0 // pred_check_branch
    %18 = sbr.rel (0) target = $region17
  $region16: #{lstm_forward.1} parent=0 // pred_region
    _
  $region17: #{lstm_forward.1} parent=0 // pred_fallthru
    _
  // Predicated region
  $region18: #{lstm_forward.1} parent=0 // pred_check
    _
  $region19: #{lstm_forward.1} parent=0 // pred_check_branch
    %20 = sbr.rel (0) target = $region21
  $region20: #{lstm_forward.1} parent=0 // pred_region
    _
  $region21: #{lstm_forward.1} parent=0 // pred_fallthru
    _
  // Predicated region
  $region22: #{lstm_forward.1} parent=0 // pred_check
    _
  $region23: #{lstm_forward.1} parent=0 // pred_check_branch
    %22 = sbr.rel (0) target = $region25
  $region24: #{lstm_forward.1} parent=0 // pred_region
    _
  $region25: #{lstm_forward.1} parent=0 // pred_fallthru
    _
  %v23 = vld [vmem:[%s0] sm:$0xff]
  %v24 = vld [vmem:[%s0 + $0x8] sm:$0xff]
  %v25 = vld [vmem:[%s0 + $0x10] sm:$0xff]
  %v26 = vld [vmem:[%s0 + $0x18] sm:$0xff]
  %v27 = vld [vmem:[%s0 + $0x20] sm:$0xff]
  %v28 = vld [vmem:[%s0 + $0x28] sm:$0xff]
  %v29 = vld [vmem:[%s0 + $0x30] sm:$0xff]
  %v30 = vld [vmem:[%s0 + $0x38] sm:$0xff]
  %v31 = vld [vmem:[%s1] sm:$0xff]
  %v32 = vld [vmem:[%s1 + $0x8] sm:$0xff]
  %v33 = vld [vmem:[%s1 + $0x10] sm:$0xff]
  %v34 = vld [vmem:[%s1 + $0x18] sm:$0xff]
  %v35 = vld [vmem:[%s1 + $0x20] sm:$0xff]
  %v36 = vld [vmem:[%s1 + $0x28] sm:$0xff]
  %v37 = vld [vmem:[%s1 + $0x30] sm:$0xff]
  %v38 = vld [vmem:[%s1 + $0x38] sm:$0xff]
  %v39 = vld [vmem:[%s1 + $0x40] sm:$0xff]
  %v40 = vld [vmem:[%s1 + $0x48] sm:$0xff]
  %v41 = vld [vmem:[%s1 + $0x50] sm:$0xff]
  %v42 = vld [vmem:[%s1 + $0x58] sm:$0xff]
  %v43 = vld [vmem:[%s1 + $0x60] sm:$0xff]
  %v44 = vld [vmem:[%s1 + $0x68] sm:$0xff]
  %v45 = vld [vmem:[%s1 + $0x70] sm:$0xff]
  %v46 = vld [vmem:[%s1 + $0x78] sm:$0xff]
  %v47 = vld [vmem:[%s3] sm:$0x1]
  %v49 = vlaneseq
  %v50 = vshrl.u32 %v49, 7
  %v51 = vsub.s32 0, %v50
  %v52 = vrot.slane %v47, %v51
  %54 = vmatprep.subr.mxu0 0.0
  %55 = vmatpush1.msra.mxu0 %v31
  %56 = vmatprep.subr.mxu0 0.0
  %57 = vmatpush1.msra.mxu0 %v32
  %58 = vmatprep.subr.mxu0 0.0
  %59 = vmatpush1.msra.mxu0 %v33
  %60 = vmatprep.subr.mxu0 0.0
  %61 = vmatpush1.msra.mxu0 %v34
  %62 = vmatprep.subr.mxu0 0.0
  %63 = vmatpush1.msra.mxu0 %v35
  %64 = vmatprep.subr.mxu0 0.0
  %65 = vmatpush1.msra.mxu0 %v36
  %66 = vmatprep.subr.mxu0 0.0
  %67 = vmatpush1.msra.mxu0 %v37
  %68 = vmatprep.subr.mxu0 0.0
  %69 = vmatpush1.msra.mxu0 %v38
  %70 = vmatprep.subr.mxu0 0.0
  %71 = vmatpush1.msra.mxu0 %v39
  %72 = vmatprep.subr.mxu0 0.0
  %73 = vmatpush1.msra.mxu0 %v40
  %74 = vmatprep.subr.mxu0 0.0
  %75 = vmatpush1.msra.mxu0 %v41
  %76 = vmatprep.subr.mxu0 0.0
  %77 = vmatpush1.msra.mxu0 %v42
  %78 = vmatprep.subr.mxu0 0.0
  %79 = vmatpush1.msra.mxu0 %v43
  %80 = vmatprep.subr.mxu0 0.0
  %81 = vmatpush1.msra.mxu0 %v44
  %82 = vmatprep.subr.mxu0 0.0
  %83 = vmatpush1.msra.mxu0 %v45
  %84 = vmatprep.subr.mxu0 0.0
  %85 = vmatpush1.msra.mxu0 %v46
  %86 = vmatprep.subr.mxu0 0.0
  %87 = vmatpush1.msra.mxu0 0.0
  %88 = vmatprep.subr.mxu0 0.0
  %89 = vmatpush1.msra.mxu0 0.0
  %90 = vmatprep.subr.mxu0 0.0
  %91 = vmatpush1.msra.mxu0 0.0
  %92 = vmatprep.subr.mxu0 0.0
  %93 = vmatpush1.msra.mxu0 0.0
  %94 = vmatprep.subr.mxu0 0.0
  %95 = vmatpush1.msra.mxu0 0.0
  %96 = vmatprep.subr.mxu0 0.0
  %97 = vmatpush1.msra.mxu0 0.0
  %98 = vmatprep.subr.mxu0 0.0
  %99 = vmatpush1.msra.mxu0 0.0
  %100 = vmatprep.subr.mxu0 0.0
  %101 = vmatpush1.msra.mxu0 0.0
  %102 = vmatprep.subr.mxu0 0.0
  %103 = vmatpush1.msra.mxu0 0.0
  %104 = vmatprep.subr.mxu0 0.0
  %105 = vmatpush1.msra.mxu0 0.0
  %106 = vmatprep.subr.mxu0 0.0
  %107 = vmatpush1.msra.mxu0 0.0
  %108 = vmatprep.subr.mxu0 0.0
  %109 = vmatpush1.msra.mxu0 0.0
  %110 = vmatprep.subr.mxu0 0.0
  %111 = vmatpush1.msra.mxu0 0.0
  %112 = vmatprep.subr.mxu0 0.0
  %113 = vmatpush1.msra.mxu0 0.0
  %114 = vmatprep.subr.mxu0 0.0
  %115 = vmatpush1.msra.mxu0 0.0
  %116 = vmatprep.subr.mxu0 0.0
  %117 = vmatpush1.msra.mxu0 0.0
  %118 = vmatprep.mubr.f32.mxu0 0.0
  %119 = vmatmul.mubr.f32.gmra.mrb[0].mxu0 %v23
  %v120 = vpop.f32.mrb[0].mxu0
  %v121 = vadd.f32 %v52, %v120
  %v122 = vpop.f32.mrb[0].mxu0
  %123 = vmatprep.mubr.f32.mxu0 0.0
  %124 = vmatmul.mubr.f32.gmra.mrb[0].mxu0 %v24
  %v125 = vpop.f32.mrb[0].mxu0
  %v126 = vadd.f32 %v52, %v125
  %v127 = vpop.f32.mrb[0].mxu0
  %128 = vmatprep.mubr.f32.mxu0 0.0
  %129 = vmatmul.mubr.f32.gmra.mrb[0].mxu0 %v25
  %v130 = vpop.f32.mrb[0].mxu0
  %v131 = vadd.f32 %v52, %v130
  %v132 = vpop.f32.mrb[0].mxu0
  %133 = vmatprep.mubr.f32.mxu0 0.0
  %134 = vmatmul.mubr.f32.gmra.mrb[0].mxu0 %v26
  %v135 = vpop.f32.mrb[0].mxu0
  %v136 = vadd.f32 %v52, %v135
  %v137 = vpop.f32.mrb[0].mxu0
  %138 = vmatprep.mubr.f32.mxu0 0.0
  %139 = vmatmul.mubr.f32.gmra.mrb[0].mxu0 %v27
  %v140 = vpop.f32.mrb[0].mxu0
  %v141 = vadd.f32 %v52, %v140
  %v142 = vpop.f32.mrb[0].mxu0
  %143 = vmatprep.mubr.f32.mxu0 0.0
  %144 = vmatmul.mubr.f32.gmra.mrb[0].mxu0 %v28
  %v145 = vpop.f32.mrb[0].mxu0
  %v146 = vadd.f32 %v52, %v145
  %v147 = vpop.f32.mrb[0].mxu0
  %148 = vmatprep.mubr.f32.mxu0 0.0
  %149 = vmatmul.mubr.f32.gmra.mrb[0].mxu0 %v29
  %v150 = vpop.f32.mrb[0].mxu0
  %v151 = vadd.f32 %v52, %v150
  %v152 = vpop.f32.mrb[0].mxu0
  %153 = vmatprep.mubr.f32.mxu0 0.0
  %154 = vmatmul.mubr.f32.gmra.mrb[0].mxu0 %v30
  %v155 = vpop.f32.mrb[0].mxu0
  %v156 = vadd.f32 %v52, %v155
  %v157 = vpop.f32.mrb[0].mxu0
  %158 = vdwg.mxu0
  %159 = vst [vmem:[#allocation2] sm:$0xff] %v121
  %160 = vst [vmem:[#allocation2 + $0x8] sm:$0xff] %v126
  %161 = vst [vmem:[#allocation2 + $0x10] sm:$0xff] %v131
  %162 = vst [vmem:[#allocation2 + $0x18] sm:$0xff] %v136
  %163 = vst [vmem:[#allocation2 + $0x20] sm:$0xff] %v141
  %164 = vst [vmem:[#allocation2 + $0x28] sm:$0xff] %v146
  %165 = vst [vmem:[#allocation2 + $0x30] sm:$0xff] %v151
  %166 = vst [vmem:[#allocation2 + $0x38] sm:$0xff] %v156
  %v167 = vld [vmem:[%s2] sm:$0xff]
  %v168 = vld [vmem:[%s2 + $0x8] sm:$0xff]
  %v169 = vld [vmem:[%s2 + $0x10] sm:$0xff]
  %v170 = vld [vmem:[%s2 + $0x18] sm:$0xff]
  %v171 = vld [vmem:[%s2 + $0x20] sm:$0xff]
  %v172 = vld [vmem:[%s2 + $0x28] sm:$0xff]
  %v173 = vld [vmem:[%s2 + $0x30] sm:$0xff]
  %v174 = vld [vmem:[%s2 + $0x38] sm:$0xff]
  %v175 = vld [vmem:[%s2 + $0x40] sm:$0xff]
  %v176 = vld [vmem:[%s2 + $0x48] sm:$0xff]
  %v177 = vld [vmem:[%s2 + $0x50] sm:$0xff]
  %v178 = vld [vmem:[%s2 + $0x58] sm:$0xff]
  %v179 = vld [vmem:[%s2 + $0x60] sm:$0xff]
  %v180 = vld [vmem:[%s2 + $0x68] sm:$0xff]
  %v181 = vld [vmem:[%s2 + $0x70] sm:$0xff]
  %v182 = vld [vmem:[%s2 + $0x78] sm:$0xff]
  %v183 = vlaneseq
  %v184 = vand.u32 %v183, 127
  %vm185 = vcmp.ge.s32.totalorder %v184, 64
  %vm186 = vcmp.lt.s32.totalorder %v184, 96
  %vm187 = vmand %vm185, %vm186
  %v188 = vld [vmem:[#allocation2] sm:$0xff]
  %189 = vmatprep.subr.mxu0 0.0
  %190 = vmatpush1.msra.mxu0 %v167
  %191 = vmatprep.subr.mxu0 0.0
  %192 = vmatpush1.msra.mxu0 %v168
  %193 = vmatprep.subr.mxu0 0.0
  %194 = vmatpush1.msra.mxu0 %v169
  %195 = vmatprep.subr.mxu0 0.0
  %196 = vmatpush1.msra.mxu0 %v170
  %197 = vmatprep.subr.mxu0 0.0
  %198 = vmatpush1.msra.mxu0 %v171
  %199 = vmatprep.subr.mxu0 0.0
  %200 = vmatpush1.msra.mxu0 %v172
  %201 = vmatprep.subr.mxu0 0.0
  %202 = vmatpush1.msra.mxu0 %v173
  %203 = vmatprep.subr.mxu0 0.0
  %204 = vmatpush1.msra.mxu0 %v174
  %205 = vmatprep.subr.mxu0 0.0
  %206 = vmatpush1.msra.mxu0 %v175
  %207 = vmatprep.subr.mxu0 0.0
  %208 = vmatpush1.msra.mxu0 %v176
  %209 = vmatprep.subr.mxu0 0.0
  %210 = vmatpush1.msra.mxu0 %v177
  %211 = vmatprep.subr.mxu0 0.0
  %212 = vmatpush1.msra.mxu0 %v178
  %213 = vmatprep.subr.mxu0 0.0
  %214 = vmatpush1.msra.mxu0 %v179
  %215 = vmatprep.subr.mxu0 0.0
  %216 = vmatpush1.msra.mxu0 %v180
  %217 = vmatprep.subr.mxu0 0.0
  %218 = vmatpush1.msra.mxu0 %v181
  %219 = vmatprep.subr.mxu0 0.0
  %220 = vmatpush1.msra.mxu0 %v182
  %221 = vmatprep.subr.mxu0 0.0
  %222 = vmatpush1.msra.mxu0 0.0
  %223 = vmatprep.subr.mxu0 0.0
  %224 = vmatpush1.msra.mxu0 0.0
  %225 = vmatprep.subr.mxu0 0.0
  %226 = vmatpush1.msra.mxu0 0.0
  %227 = vmatprep.subr.mxu0 0.0
  %228 = vmatpush1.msra.mxu0 0.0
  %229 = vmatprep.subr.mxu0 0.0
  %230 = vmatpush1.msra.mxu0 0.0
  %231 = vmatprep.subr.mxu0 0.0
  %232 = vmatpush1.msra.mxu0 0.0
  %233 = vmatprep.subr.mxu0 0.0
  %234 = vmatpush1.msra.mxu0 0.0
  %235 = vmatprep.subr.mxu0 0.0
  %236 = vmatpush1.msra.mxu0 0.0
  %237 = vmatprep.subr.mxu0 0.0
  %238 = vmatpush1.msra.mxu0 0.0
  %239 = vmatprep.subr.mxu0 0.0
  %240 = vmatpush1.msra.mxu0 0.0
  %241 = vmatprep.subr.mxu0 0.0
  %242 = vmatpush1.msra.mxu0 0.0
  %243 = vmatprep.subr.mxu0 0.0
  %244 = vmatpush1.msra.mxu0 0.0
  %245 = vmatprep.subr.mxu0 0.0
  %246 = vmatpush1.msra.mxu0 0.0
  %247 = vmatprep.subr.mxu0 0.0
  %248 = vmatpush1.msra.mxu0 0.0
  %249 = vmatprep.subr.mxu0 0.0
  %250 = vmatpush1.msra.mxu0 0.0
  %251 = vmatprep.subr.mxu0 0.0
  %252 = vmatpush1.msra.mxu0 0.0
  %253 = vmatprep.mubr.f32.mxu0 0.0
  %254 = vmatmul.mubr.f32.gmra.mrb[0].mxu0 0.0
  %v255 = vpop.f32.mrb[0].mxu0
  %v256 = vadd.f32 0.0, %v255
  %v257 = vpop.f32.mrb[0].mxu0
  %258 = vdwg.mxu0
  %v259 = vadd.f32 %v188, %v256
  %v260 = vxor.u32 %v259, 2147483648
  %v261 = vmul.f32 %v260, 1.442695
  %v262 = vpow.pop %v261
  %v263 = vadd.f32 %v262, 1.0
  %v264 = vrcp.pop %v263
  %v265 = vmul.f32 1.0, %v264
  %v266 = vtanh.pop %v259
  %v267 = vsel %vm187, %v266, %v265
  %268 = vrot.lane.b32.xlu0 %v267, 96
  %v269 = vpop.permute.xlu0 %268
  %270 = vrot.lane.b32.xlu0 %v267, 64
  %v271 = vpop.permute.xlu0 %270
  %272 = vrot.lane.b32.xlu0 %v267, 32
  %v273 = vpop.permute.xlu0 %272
  %v274 = vmul.f32 %v269, 0.0
  %v275 = vmul.f32 %v267, %v271
  %v276 = vadd.f32 %v274, %v275
  %v277 = vtanh.pop %v276
  %v278 = vmul.f32 %v273, %v277
  %s279 = scalar_lea.vmem [#allocation2], 8
  %v280 = vld [vmem:[%s279] sm:$0xff]
  %281 = vmatprep.subr.mxu0 0.0
  %282 = vmatpush1.msra.mxu0 %v167
  %283 = vmatprep.subr.mxu0 0.0
  %284 = vmatpush1.msra.mxu0 %v168
  %285 = vmatprep.subr.mxu0 0.0
  %286 = vmatpush1.msra.mxu0 %v169
  %287 = vmatprep.subr.mxu0 0.0
  %288 = vmatpush1.msra.mxu0 %v170
  %289 = vmatprep.subr.mxu0 0.0
  %290 = vmatpush1.msra.mxu0 %v171
  %291 = vmatprep.subr.mxu0 0.0
  %292 = vmatpush1.msra.mxu0 %v172
  %293 = vmatprep.subr.mxu0 0.0
  %294 = vmatpush1.msra.mxu0 %v173
  %295 = vmatprep.subr.mxu0 0.0
  %296 = vmatpush1.msra.mxu0 %v174
  %297 = vmatprep.subr.mxu0 0.0
  %298 = vmatpush1.msra.mxu0 %v175
  %299 = vmatprep.subr.mxu0 0.0
  %300 = vmatpush1.msra.mxu0 %v176
  %301 = vmatprep.subr.mxu0 0.0
  %302 = vmatpush1.msra.mxu0 %v177
  %303 = vmatprep.subr.mxu0 0.0
  %304 = vmatpush1.msra.mxu0 %v178
  %305 = vmatprep.subr.mxu0 0.0
  %306 = vmatpush1.msra.mxu0 %v179
  %307 = vmatprep.subr.mxu0 0.0
  %308 = vmatpush1.msra.mxu0 %v180
  %309 = vmatprep.subr.mxu0 0.0
  %310 = vmatpush1.msra.mxu0 %v181
  %311 = vmatprep.subr.mxu0 0.0
  %312 = vmatpush1.msra.mxu0 %v182
  %313 = vmatprep.subr.mxu0 0.0
  %314 = vmatpush1.msra.mxu0 0.0
  %315 = vmatprep.subr.mxu0 0.0
  %316 = vmatpush1.msra.mxu0 0.0
  %317 = vmatprep.subr.mxu0 0.0
  %318 = vmatpush1.msra.mxu0 0.0
  %319 = vmatprep.subr.mxu0 0.0
  %320 = vmatpush1.msra.mxu0 0.0
  %321 = vmatprep.subr.mxu0 0.0
  %322 = vmatpush1.msra.mxu0 0.0
  %323 = vmatprep.subr.mxu0 0.0
  %324 = vmatpush1.msra.mxu0 0.0
  %325 = vmatprep.subr.mxu0 0.0
  %326 = vmatpush1.msra.mxu0 0.0
  %327 = vmatprep.subr.mxu0 0.0
  %328 = vmatpush1.msra.mxu0 0.0
  %329 = vmatprep.subr.mxu0 0.0
  %330 = vmatpush1.msra.mxu0 0.0
  %331 = vmatprep.subr.mxu0 0.0
  %332 = vmatpush1.msra.mxu0 0.0
  %333 = vmatprep.subr.mxu0 0.0
  %334 = vmatpush1.msra.mxu0 0.0
  %335 = vmatprep.subr.mxu0 0.0
  %336 = vmatpush1.msra.mxu0 0.0
  %337 = vmatprep.subr.mxu0 0.0
  %338 = vmatpush1.msra.mxu0 0.0
  %339 = vmatprep.subr.mxu0 0.0
  %340 = vmatpush1.msra.mxu0 0.0
  %341 = vmatprep.subr.mxu0 0.0
  %342 = vmatpush1.msra.mxu0 0.0
  %343 = vmatprep.subr.mxu0 0.0
  %344 = vmatpush1.msra.mxu0 0.0
  %345 = vmatprep.mubr.f32.mxu0 0.0
  %346 = vmatmul.mubr.f32.gmra.mrb[0].mxu0 %v278
  %v347 = vpop.f32.mrb[0].mxu0
  %v348 = vadd.f32 0.0, %v347
  %v349 = vpop.f32.mrb[0].mxu0
  %350 = vdwg.mxu0
  %v351 = vadd.f32 %v280, %v348
  %v352 = vxor.u32 %v351, 2147483648
  %v353 = vmul.f32 %v352, 1.442695
  %v354 = vpow.pop %v353
  %v355 = vadd.f32 %v354, 1.0
  %v356 = vrcp.pop %v355
  %v357 = vmul.f32 1.0, %v356
  %v358 = vtanh.pop %v351
  %v359 = vsel %vm187, %v358, %v357
  %360 = vrot.lane.b32.xlu0 %v359, 96
  %v361 = vpop.permute.xlu0 %360
  %362 = vrot.lane.b32.xlu0 %v359, 64
  %v363 = vpop.permute.xlu0 %362
  %364 = vrot.lane.b32.xlu0 %v359, 32
  %v365 = vpop.permute.xlu0 %364
  %v366 = vmul.f32 %v361, %v276
  %v367 = vmul.f32 %v359, %v363
  %v368 = vadd.f32 %v366, %v367
  %v369 = vtanh.pop %v368
  %v370 = vmul.f32 %v365, %v369
  %s371 = scalar_lea.vmem [#allocation2], 16
  %v372 = vld [vmem:[%s371] sm:$0xff]
  %373 = vmatprep.subr.mxu0 0.0
  %374 = vmatpush1.msra.mxu0 %v167
  %375 = vmatprep.subr.mxu0 0.0
  %376 = vmatpush1.msra.mxu0 %v168
  %377 = vmatprep.subr.mxu0 0.0
  %378 = vmatpush1.msra.mxu0 %v169
  %379 = vmatprep.subr.mxu0 0.0
  %380 = vmatpush1.msra.mxu0 %v170
  %381 = vmatprep.subr.mxu0 0.0
  %382 = vmatpush1.msra.mxu0 %v171
  %383 = vmatprep.subr.mxu0 0.0
  %384 = vmatpush1.msra.mxu0 %v172
  %385 = vmatprep.subr.mxu0 0.0
  %386 = vmatpush1.msra.mxu0 %v173
  %387 = vmatprep.subr.mxu0 0.0
  %388 = vmatpush1.msra.mxu0 %v174
  %389 = vmatprep.subr.mxu0 0.0
  %390 = vmatpush1.msra.mxu0 %v175
  %391 = vmatprep.subr.mxu0 0.0
  %392 = vmatpush1.msra.mxu0 %v176
  %393 = vmatprep.subr.mxu0 0.0
  %394 = vmatpush1.msra.mxu0 %v177
  %395 = vmatprep.subr.mxu0 0.0
  %396 = vmatpush1.msra.mxu0 %v178
  %397 = vmatprep.subr.mxu0 0.0
  %398 = vmatpush1.msra.mxu0 %v179
  %399 = vmatprep.subr.mxu0 0.0
  %400 = vmatpush1.msra.mxu0 %v180
  %401 = vmatprep.subr.mxu0 0.0
  %402 = vmatpush1.msra.mxu0 %v181
  %403 = vmatprep.subr.mxu0 0.0
  %404 = vmatpush1.msra.mxu0 %v182
  %405 = vmatprep.subr.mxu0 0.0
  %406 = vmatpush1.msra.mxu0 0.0
  %407 = vmatprep.subr.mxu0 0.0
  %408 = vmatpush1.msra.mxu0 0.0
  %409 = vmatprep.subr.mxu0 0.0
  %410 = vmatpush1.msra.mxu0 0.0
  %411 = vmatprep.subr.mxu0 0.0
  %412 = vmatpush1.msra.mxu0 0.0
  %413 = vmatprep.subr.mxu0 0.0
  %414 = vmatpush1.msra.mxu0 0.0
  %415 = vmatprep.subr.mxu0 0.0
  %416 = vmatpush1.msra.mxu0 0.0
  %417 = vmatprep.subr.mxu0 0.0
  %418 = vmatpush1.msra.mxu0 0.0
  %419 = vmatprep.subr.mxu0 0.0
  %420 = vmatpush1.msra.mxu0 0.0
  %421 = vmatprep.subr.mxu0 0.0
  %422 = vmatpush1.msra.mxu0 0.0
  %423 = vmatprep.subr.mxu0 0.0
  %424 = vmatpush1.msra.mxu0 0.0
  %425 = vmatprep.subr.mxu0 0.0
  %426 = vmatpush1.msra.mxu0 0.0
  %427 = vmatprep.subr.mxu0 0.0
  %428 = vmatpush1.msra.mxu0 0.0
  %429 = vmatprep.subr.mxu0 0.0
  %430 = vmatpush1.msra.mxu0 0.0
  %431 = vmatprep.subr.mxu0 0.0
  %432 = vmatpush1.msra.mxu0 0.0
  %433 = vmatprep.subr.mxu0 0.0
  %434 = vmatpush1.msra.mxu0 0.0
  %435 = vmatprep.subr.mxu0 0.0
  %436 = vmatpush1.msra.mxu0 0.0
  %437 = vmatprep.mubr.f32.mxu0 0.0
  %438 = vmatmul.mubr.f32.gmra.mrb[0].mxu0 %v370
  %v439 = vpop.f32.mrb[0].mxu0
  %v440 = vadd.f32 0.0, %v439
  %v441 = vpop.f32.mrb[0].mxu0
  %442 = vdwg.mxu0
  %v443 = vadd.f32 %v372, %v440
  %v444 = vxor.u32 %v443, 2147483648
  %v445 = vmul.f32 %v444, 1.442695
  %v446 = vpow.pop %v445
  %v447 = vadd.f32 %v446, 1.0
  %v448 = vrcp.pop %v447
  %v449 = vmul.f32 1.0, %v448
  %v450 = vtanh.pop %v443
  %v451 = vsel %vm187, %v450, %v449
  %452 = vrot.lane.b32.xlu0 %v451, 96
  %v453 = vpop.permute.xlu0 %452
  %454 = vrot.lane.b32.xlu0 %v451, 64
  %v455 = vpop.permute.xlu0 %454
  %456 = vrot.lane.b32.xlu0 %v451, 32
  %v457 = vpop.permute.xlu0 %456
  %v458 = vmul.f32 %v453, %v368
  %v459 = vmul.f32 %v451, %v455
  %v460 = vadd.f32 %v458, %v459
  %v461 = vtanh.pop %v460
  %v462 = vmul.f32 %v457, %v461
  %s463 = scalar_lea.vmem [#allocation2], 24
  %v464 = vld [vmem:[%s463] sm:$0xff]
  %465 = vmatprep.subr.mxu0 0.0
  %466 = vmatpush1.msra.mxu0 %v167
  %467 = vmatprep.subr.mxu0 0.0
  %468 = vmatpush1.msra.mxu0 %v168
  %469 = vmatprep.subr.mxu0 0.0
  %470 = vmatpush1.msra.mxu0 %v169
  %471 = vmatprep.subr.mxu0 0.0
  %472 = vmatpush1.msra.mxu0 %v170
  %473 = vmatprep.subr.mxu0 0.0
  %474 = vmatpush1.msra.mxu0 %v171
  %475 = vmatprep.subr.mxu0 0.0
  %476 = vmatpush1.msra.mxu0 %v172
  %477 = vmatprep.subr.mxu0 0.0
  %478 = vmatpush1.msra.mxu0 %v173
  %479 = vmatprep.subr.mxu0 0.0
  %480 = vmatpush1.msra.mxu0 %v174
  %481 = vmatprep.subr.mxu0 0.0
  %482 = vmatpush1.msra.mxu0 %v175
  %483 = vmatprep.subr.mxu0 0.0
  %484 = vmatpush1.msra.mxu0 %v176
  %485 = vmatprep.subr.mxu0 0.0
  %486 = vmatpush1.msra.mxu0 %v177
  %487 = vmatprep.subr.mxu0 0.0
  %488 = vmatpush1.msra.mxu0 %v178
  %489 = vmatprep.subr.mxu0 0.0
  %490 = vmatpush1.msra.mxu0 %v179
  %491 = vmatprep.subr.mxu0 0.0
  %492 = vmatpush1.msra.mxu0 %v180
  %493 = vmatprep.subr.mxu0 0.0
  %494 = vmatpush1.msra.mxu0 %v181
  %495 = vmatprep.subr.mxu0 0.0
  %496 = vmatpush1.msra.mxu0 %v182
  %497 = vmatprep.subr.mxu0 0.0
  %498 = vmatpush1.msra.mxu0 0.0
  %499 = vmatprep.subr.mxu0 0.0
  %500 = vmatpush1.msra.mxu0 0.0
  %501 = vmatprep.subr.mxu0 0.0
  %502 = vmatpush1.msra.mxu0 0.0
  %503 = vmatprep.subr.mxu0 0.0
  %504 = vmatpush1.msra.mxu0 0.0
  %505 = vmatprep.subr.mxu0 0.0
  %506 = vmatpush1.msra.mxu0 0.0
  %507 = vmatprep.subr.mxu0 0.0
  %508 = vmatpush1.msra.mxu0 0.0
  %509 = vmatprep.subr.mxu0 0.0
  %510 = vmatpush1.msra.mxu0 0.0
  %511 = vmatprep.subr.mxu0 0.0
  %512 = vmatpush1.msra.mxu0 0.0
  %513 = vmatprep.subr.mxu0 0.0
  %514 = vmatpush1.msra.mxu0 0.0
  %515 = vmatprep.subr.mxu0 0.0
  %516 = vmatpush1.msra.mxu0 0.0
  %517 = vmatprep.subr.mxu0 0.0
  %518 = vmatpush1.msra.mxu0 0.0
  %519 = vmatprep.subr.mxu0 0.0
  %520 = vmatpush1.msra.mxu0 0.0
  %521 = vmatprep.subr.mxu0 0.0
  %522 = vmatpush1.msra.mxu0 0.0
  %523 = vmatprep.subr.mxu0 0.0
  %524 = vmatpush1.msra.mxu0 0.0
  %525 = vmatprep.subr.mxu0 0.0
  %526 = vmatpush1.msra.mxu0 0.0
  %527 = vmatprep.subr.mxu0 0.0
  %528 = vmatpush1.msra.mxu0 0.0
  %529 = vmatprep.mubr.f32.mxu0 0.0
  %530 = vmatmul.mubr.f32.gmra.mrb[0].mxu0 %v462
  %v531 = vpop.f32.mrb[0].mxu0
  %v532 = vadd.f32 0.0, %v531
  %v533 = vpop.f32.mrb[0].mxu0
  %534 = vdwg.mxu0
  %v535 = vadd.f32 %v464, %v532
  %v536 = vxor.u32 %v535, 2147483648
  %v537 = vmul.f32 %v536, 1.442695
  %v538 = vpow.pop %v537
  %v539 = vadd.f32 %v538, 1.0
  %v540 = vrcp.pop %v539
  %v541 = vmul.f32 1.0, %v540
  %v542 = vtanh.pop %v535
  %v543 = vsel %vm187, %v542, %v541
  %544 = vrot.lane.b32.xlu0 %v543, 96
  %v545 = vpop.permute.xlu0 %544
  %546 = vrot.lane.b32.xlu0 %v543, 64
  %v547 = vpop.permute.xlu0 %546
  %548 = vrot.lane.b32.xlu0 %v543, 32
  %v549 = vpop.permute.xlu0 %548
  %v550 = vmul.f32 %v545, %v460
  %v551 = vmul.f32 %v543, %v547
  %v552 = vadd.f32 %v550, %v551
  %v553 = vtanh.pop %v552
  %v554 = vmul.f32 %v549, %v553
  %s555 = scalar_lea.vmem [#allocation2], 32
  %v556 = vld [vmem:[%s555] sm:$0xff]
  %557 = vmatprep.subr.mxu0 0.0
  %558 = vmatpush1.msra.mxu0 %v167
  %559 = vmatprep.subr.mxu0 0.0
  %560 = vmatpush1.msra.mxu0 %v168
  %561 = vmatprep.subr.mxu0 0.0
  %562 = vmatpush1.msra.mxu0 %v169
  %563 = vmatprep.subr.mxu0 0.0
  %564 = vmatpush1.msra.mxu0 %v170
  %565 = vmatprep.subr.mxu0 0.0
  %566 = vmatpush1.msra.mxu0 %v171
  %567 = vmatprep.subr.mxu0 0.0
  %568 = vmatpush1.msra.mxu0 %v172
  %569 = vmatprep.subr.mxu0 0.0
  %570 = vmatpush1.msra.mxu0 %v173
  %571 = vmatprep.subr.mxu0 0.0
  %572 = vmatpush1.msra.mxu0 %v174
  %573 = vmatprep.subr.mxu0 0.0
  %574 = vmatpush1.msra.mxu0 %v175
  %575 = vmatprep.subr.mxu0 0.0
  %576 = vmatpush1.msra.mxu0 %v176
  %577 = vmatprep.subr.mxu0 0.0
  %578 = vmatpush1.msra.mxu0 %v177
  %579 = vmatprep.subr.mxu0 0.0
  %580 = vmatpush1.msra.mxu0 %v178
  %581 = vmatprep.subr.mxu0 0.0
  %582 = vmatpush1.msra.mxu0 %v179
  %583 = vmatprep.subr.mxu0 0.0
  %584 = vmatpush1.msra.mxu0 %v180
  %585 = vmatprep.subr.mxu0 0.0
  %586 = vmatpush1.msra.mxu0 %v181
  %587 = vmatprep.subr.mxu0 0.0
  %588 = vmatpush1.msra.mxu0 %v182
  %589 = vmatprep.subr.mxu0 0.0
  %590 = vmatpush1.msra.mxu0 0.0
  %591 = vmatprep.subr.mxu0 0.0
  %592 = vmatpush1.msra.mxu0 0.0
  %593 = vmatprep.subr.mxu0 0.0
  %594 = vmatpush1.msra.mxu0 0.0
  %595 = vmatprep.subr.mxu0 0.0
  %596 = vmatpush1.msra.mxu0 0.0
  %597 = vmatprep.subr.mxu0 0.0
  %598 = vmatpush1.msra.mxu0 0.0
  %599 = vmatprep.subr.mxu0 0.0
  %600 = vmatpush1.msra.mxu0 0.0
  %601 = vmatprep.subr.mxu0 0.0
  %602 = vmatpush1.msra.mxu0 0.0
  %603 = vmatprep.subr.mxu0 0.0
  %604 = vmatpush1.msra.mxu0 0.0
  %605 = vmatprep.subr.mxu0 0.0
  %606 = vmatpush1.msra.mxu0 0.0
  %607 = vmatprep.subr.mxu0 0.0
  %608 = vmatpush1.msra.mxu0 0.0
  %609 = vmatprep.subr.mxu0 0.0
  %610 = vmatpush1.msra.mxu0 0.0
  %611 = vmatprep.subr.mxu0 0.0
  %612 = vmatpush1.msra.mxu0 0.0
  %613 = vmatprep.subr.mxu0 0.0
  %614 = vmatpush1.msra.mxu0 0.0
  %615 = vmatprep.subr.mxu0 0.0
  %616 = vmatpush1.msra.mxu0 0.0
  %617 = vmatprep.subr.mxu0 0.0
  %618 = vmatpush1.msra.mxu0 0.0
  %619 = vmatprep.subr.mxu0 0.0
  %620 = vmatpush1.msra.mxu0 0.0
  %621 = vmatprep.mubr.f32.mxu0 0.0
  %622 = vmatmul.mubr.f32.gmra.mrb[0].mxu0 %v554
  %v623 = vpop.f32.mrb[0].mxu0
  %v624 = vadd.f32 0.0, %v623
  %v625 = vpop.f32.mrb[0].mxu0
  %626 = vdwg.mxu0
  %v627 = vadd.f32 %v556, %v624
  %v628 = vxor.u32 %v627, 2147483648
  %v629 = vmul.f32 %v628, 1.442695
  %v630 = vpow.pop %v629
  %v631 = vadd.f32 %v630, 1.0
  %v632 = vrcp.pop %v631
  %v633 = vmul.f32 1.0, %v632
  %v634 = vtanh.pop %v627
  %v635 = vsel %vm187, %v634, %v633
  %636 = vrot.lane.b32.xlu0 %v635, 96
  %v637 = vpop.permute.xlu0 %636
  %638 = vrot.lane.b32.xlu0 %v635, 64
  %v639 = vpop.permute.xlu0 %638
  %640 = vrot.lane.b32.xlu0 %v635, 32
  %v641 = vpop.permute.xlu0 %640
  %v642 = vmul.f32 %v637, %v552
  %v643 = vmul.f32 %v635, %v639
  %v644 = vadd.f32 %v642, %v643
  %v645 = vtanh.pop %v644
  %v646 = vmul.f32 %v641, %v645
  %s647 = scalar_lea.vmem [#allocation2], 40
  %v648 = vld [vmem:[%s647] sm:$0xff]
  %649 = vmatprep.subr.mxu0 0.0
  %650 = vmatpush1.msra.mxu0 %v167
  %651 = vmatprep.subr.mxu0 0.0
  %652 = vmatpush1.msra.mxu0 %v168
  %653 = vmatprep.subr.mxu0 0.0
  %654 = vmatpush1.msra.mxu0 %v169
  %655 = vmatprep.subr.mxu0 0.0
  %656 = vmatpush1.msra.mxu0 %v170
  %657 = vmatprep.subr.mxu0 0.0
  %658 = vmatpush1.msra.mxu0 %v171
  %659 = vmatprep.subr.mxu0 0.0
  %660 = vmatpush1.msra.mxu0 %v172
  %661 = vmatprep.subr.mxu0 0.0
  %662 = vmatpush1.msra.mxu0 %v173
  %663 = vmatprep.subr.mxu0 0.0
  %664 = vmatpush1.msra.mxu0 %v174
  %665 = vmatprep.subr.mxu0 0.0
  %666 = vmatpush1.msra.mxu0 %v175
  %667 = vmatprep.subr.mxu0 0.0
  %668 = vmatpush1.msra.mxu0 %v176
  %669 = vmatprep.subr.mxu0 0.0
  %670 = vmatpush1.msra.mxu0 %v177
  %671 = vmatprep.subr.mxu0 0.0
  %672 = vmatpush1.msra.mxu0 %v178
  %673 = vmatprep.subr.mxu0 0.0
  %674 = vmatpush1.msra.mxu0 %v179
  %675 = vmatprep.subr.mxu0 0.0
  %676 = vmatpush1.msra.mxu0 %v180
  %677 = vmatprep.subr.mxu0 0.0
  %678 = vmatpush1.msra.mxu0 %v181
  %679 = vmatprep.subr.mxu0 0.0
  %680 = vmatpush1.msra.mxu0 %v182
  %681 = vmatprep.subr.mxu0 0.0
  %682 = vmatpush1.msra.mxu0 0.0
  %683 = vmatprep.subr.mxu0 0.0
  %684 = vmatpush1.msra.mxu0 0.0
  %685 = vmatprep.subr.mxu0 0.0
  %686 = vmatpush1.msra.mxu0 0.0
  %687 = vmatprep.subr.mxu0 0.0
  %688 = vmatpush1.msra.mxu0 0.0
  %689 = vmatprep.subr.mxu0 0.0
  %690 = vmatpush1.msra.mxu0 0.0
  %691 = vmatprep.subr.mxu0 0.0
  %692 = vmatpush1.msra.mxu0 0.0
  %693 = vmatprep.subr.mxu0 0.0
  %694 = vmatpush1.msra.mxu0 0.0
  %695 = vmatprep.subr.mxu0 0.0
  %696 = vmatpush1.msra.mxu0 0.0
  %697 = vmatprep.subr.mxu0 0.0
  %698 = vmatpush1.msra.mxu0 0.0
  %699 = vmatprep.subr.mxu0 0.0
  %700 = vmatpush1.msra.mxu0 0.0
  %701 = vmatprep.subr.mxu0 0.0
  %702 = vmatpush1.msra.mxu0 0.0
  %703 = vmatprep.subr.mxu0 0.0
  %704 = vmatpush1.msra.mxu0 0.0
  %705 = vmatprep.subr.mxu0 0.0
  %706 = vmatpush1.msra.mxu0 0.0
  %707 = vmatprep.subr.mxu0 0.0
  %708 = vmatpush1.msra.mxu0 0.0
  %709 = vmatprep.subr.mxu0 0.0
  %710 = vmatpush1.msra.mxu0 0.0
  %711 = vmatprep.subr.mxu0 0.0
  %712 = vmatpush1.msra.mxu0 0.0
  %713 = vmatprep.mubr.f32.mxu0 0.0
  %714 = vmatmul.mubr.f32.gmra.mrb[0].mxu0 %v646
  %v715 = vpop.f32.mrb[0].mxu0
  %v716 = vadd.f32 0.0, %v715
  %v717 = vpop.f32.mrb[0].mxu0
  %718 = vdwg.mxu0
  %v719 = vadd.f32 %v648, %v716
  %v720 = vxor.u32 %v719, 2147483648
  %v721 = vmul.f32 %v720, 1.442695
  %v722 = vpow.pop %v721
  %v723 = vadd.f32 %v722, 1.0
  %v724 = vrcp.pop %v723
  %v725 = vmul.f32 1.0, %v724
  %v726 = vtanh.pop %v719
  %v727 = vsel %vm187, %v726, %v725
  %728 = vrot.lane.b32.xlu0 %v727, 96
  %v729 = vpop.permute.xlu0 %728
  %730 = vrot.lane.b32.xlu0 %v727, 64
  %v731 = vpop.permute.xlu0 %730
  %732 = vrot.lane.b32.xlu0 %v727, 32
  %v733 = vpop.permute.xlu0 %732
  %v734 = vmul.f32 %v729, %v644
  %v735 = vmul.f32 %v727, %v731
  %v736 = vadd.f32 %v734, %v735
  %v737 = vtanh.pop %v736
  %v738 = vmul.f32 %v733, %v737
  %s739 = scalar_lea.vmem [#allocation2], 48
  %v740 = vld [vmem:[%s739] sm:$0xff]
  %741 = vmatprep.subr.mxu0 0.0
  %742 = vmatpush1.msra.mxu0 %v167
  %743 = vmatprep.subr.mxu0 0.0
  %744 = vmatpush1.msra.mxu0 %v168
  %745 = vmatprep.subr.mxu0 0.0
  %746 = vmatpush1.msra.mxu0 %v169
  %747 = vmatprep.subr.mxu0 0.0
  %748 = vmatpush1.msra.mxu0 %v170
  %749 = vmatprep.subr.mxu0 0.0
  %750 = vmatpush1.msra.mxu0 %v171
  %751 = vmatprep.subr.mxu0 0.0
  %752 = vmatpush1.msra.mxu0 %v172
  %753 = vmatprep.subr.mxu0 0.0
  %754 = vmatpush1.msra.mxu0 %v173
  %755 = vmatprep.subr.mxu0 0.0
  %756 = vmatpush1.msra.mxu0 %v174
  %757 = vmatprep.subr.mxu0 0.0
  %758 = vmatpush1.msra.mxu0 %v175
  %759 = vmatprep.subr.mxu0 0.0
  %760 = vmatpush1.msra.mxu0 %v176
  %761 = vmatprep.subr.mxu0 0.0
  %762 = vmatpush1.msra.mxu0 %v177
  %763 = vmatprep.subr.mxu0 0.0
  %764 = vmatpush1.msra.mxu0 %v178
  %765 = vmatprep.subr.mxu0 0.0
  %766 = vmatpush1.msra.mxu0 %v179
  %767 = vmatprep.subr.mxu0 0.0
  %768 = vmatpush1.msra.mxu0 %v180
  %769 = vmatprep.subr.mxu0 0.0
  %770 = vmatpush1.msra.mxu0 %v181
  %771 = vmatprep.subr.mxu0 0.0
  %772 = vmatpush1.msra.mxu0 %v182
  %773 = vmatprep.subr.mxu0 0.0
  %774 = vmatpush1.msra.mxu0 0.0
  %775 = vmatprep.subr.mxu0 0.0
  %776 = vmatpush1.msra.mxu0 0.0
  %777 = vmatprep.subr.mxu0 0.0
  %778 = vmatpush1.msra.mxu0 0.0
  %779 = vmatprep.subr.mxu0 0.0
  %780 = vmatpush1.msra.mxu0 0.0
  %781 = vmatprep.subr.mxu0 0.0
  %782 = vmatpush1.msra.mxu0 0.0
  %783 = vmatprep.subr.mxu0 0.0
  %784 = vmatpush1.msra.mxu0 0.0
  %785 = vmatprep.subr.mxu0 0.0
  %786 = vmatpush1.msra.mxu0 0.0
  %787 = vmatprep.subr.mxu0 0.0
  %788 = vmatpush1.msra.mxu0 0.0
  %789 = vmatprep.subr.mxu0 0.0
  %790 = vmatpush1.msra.mxu0 0.0
  %791 = vmatprep.subr.mxu0 0.0
  %792 = vmatpush1.msra.mxu0 0.0
  %793 = vmatprep.subr.mxu0 0.0
  %794 = vmatpush1.msra.mxu0 0.0
  %795 = vmatprep.subr.mxu0 0.0
  %796 = vmatpush1.msra.mxu0 0.0
  %797 = vmatprep.subr.mxu0 0.0
  %798 = vmatpush1.msra.mxu0 0.0
  %799 = vmatprep.subr.mxu0 0.0
  %800 = vmatpush1.msra.mxu0 0.0
  %801 = vmatprep.subr.mxu0 0.0
  %802 = vmatpush1.msra.mxu0 0.0
  %803 = vmatprep.subr.mxu0 0.0
  %804 = vmatpush1.msra.mxu0 0.0
  %805 = vmatprep.mubr.f32.mxu0 0.0
  %806 = vmatmul.mubr.f32.gmra.mrb[0].mxu0 %v738
  %v807 = vpop.f32.mrb[0].mxu0
  %v808 = vadd.f32 0.0, %v807
  %v809 = vpop.f32.mrb[0].mxu0
  %810 = vdwg.mxu0
  %v811 = vadd.f32 %v740, %v808
  %v812 = vxor.u32 %v811, 2147483648
  %v813 = vmul.f32 %v812, 1.442695
  %v814 = vpow.pop %v813
  %v815 = vadd.f32 %v814, 1.0
  %v816 = vrcp.pop %v815
  %v817 = vmul.f32 1.0, %v816
  %v818 = vtanh.pop %v811
  %v819 = vsel %vm187, %v818, %v817
  %820 = vrot.lane.b32.xlu0 %v819, 96
  %v821 = vpop.permute.xlu0 %820
  %822 = vrot.lane.b32.xlu0 %v819, 64
  %v823 = vpop.permute.xlu0 %822
  %824 = vrot.lane.b32.xlu0 %v819, 32
  %v825 = vpop.permute.xlu0 %824
  %v826 = vmul.f32 %v821, %v736
  %v827 = vmul.f32 %v819, %v823
  %v828 = vadd.f32 %v826, %v827
  %v829 = vtanh.pop %v828
  %v830 = vmul.f32 %v825, %v829
  %s831 = scalar_lea.vmem [#allocation2], 56
  %v832 = vld [vmem:[%s831] sm:$0xff]
  %833 = vmatprep.subr.mxu0 0.0
  %834 = vmatpush1.msra.mxu0 %v167
  %835 = vmatprep.subr.mxu0 0.0
  %836 = vmatpush1.msra.mxu0 %v168
  %837 = vmatprep.subr.mxu0 0.0
  %838 = vmatpush1.msra.mxu0 %v169
  %839 = vmatprep.subr.mxu0 0.0
  %840 = vmatpush1.msra.mxu0 %v170
  %841 = vmatprep.subr.mxu0 0.0
  %842 = vmatpush1.msra.mxu0 %v171
  %843 = vmatprep.subr.mxu0 0.0
  %844 = vmatpush1.msra.mxu0 %v172
  %845 = vmatprep.subr.mxu0 0.0
  %846 = vmatpush1.msra.mxu0 %v173
  %847 = vmatprep.subr.mxu0 0.0
  %848 = vmatpush1.msra.mxu0 %v174
  %849 = vmatprep.subr.mxu0 0.0
  %850 = vmatpush1.msra.mxu0 %v175
  %851 = vmatprep.subr.mxu0 0.0
  %852 = vmatpush1.msra.mxu0 %v176
  %853 = vmatprep.subr.mxu0 0.0
  %854 = vmatpush1.msra.mxu0 %v177
  %855 = vmatprep.subr.mxu0 0.0
  %856 = vmatpush1.msra.mxu0 %v178
  %857 = vmatprep.subr.mxu0 0.0
  %858 = vmatpush1.msra.mxu0 %v179
  %859 = vmatprep.subr.mxu0 0.0
  %860 = vmatpush1.msra.mxu0 %v180
  %861 = vmatprep.subr.mxu0 0.0
  %862 = vmatpush1.msra.mxu0 %v181
  %863 = vmatprep.subr.mxu0 0.0
  %864 = vmatpush1.msra.mxu0 %v182
  %865 = vmatprep.subr.mxu0 0.0
  %866 = vmatpush1.msra.mxu0 0.0
  %867 = vmatprep.subr.mxu0 0.0
  %868 = vmatpush1.msra.mxu0 0.0
  %869 = vmatprep.subr.mxu0 0.0
  %870 = vmatpush1.msra.mxu0 0.0
  %871 = vmatprep.subr.mxu0 0.0
  %872 = vmatpush1.msra.mxu0 0.0
  %873 = vmatprep.subr.mxu0 0.0
  %874 = vmatpush1.msra.mxu0 0.0
  %875 = vmatprep.subr.mxu0 0.0
  %876 = vmatpush1.msra.mxu0 0.0
  %877 = vmatprep.subr.mxu0 0.0
  %878 = vmatpush1.msra.mxu0 0.0
  %879 = vmatprep.subr.mxu0 0.0
  %880 = vmatpush1.msra.mxu0 0.0
  %881 = vmatprep.subr.mxu0 0.0
  %882 = vmatpush1.msra.mxu0 0.0
  %883 = vmatprep.subr.mxu0 0.0
  %884 = vmatpush1.msra.mxu0 0.0
  %885 = vmatprep.subr.mxu0 0.0
  %886 = vmatpush1.msra.mxu0 0.0
  %887 = vmatprep.subr.mxu0 0.0
  %888 = vmatpush1.msra.mxu0 0.0
  %889 = vmatprep.subr.mxu0 0.0
  %890 = vmatpush1.msra.mxu0 0.0
  %891 = vmatprep.subr.mxu0 0.0
  %892 = vmatpush1.msra.mxu0 0.0
  %893 = vmatprep.subr.mxu0 0.0
  %894 = vmatpush1.msra.mxu0 0.0
  %895 = vmatprep.subr.mxu0 0.0
  %896 = vmatpush1.msra.mxu0 0.0
  %897 = vmatprep.mubr.f32.mxu0 0.0
  %898 = vmatmul.mubr.f32.gmra.mrb[0].mxu0 %v830
  %v899 = vpop.f32.mrb[0].mxu0
  %v900 = vadd.f32 0.0, %v899
  %v901 = vpop.f32.mrb[0].mxu0
  %902 = vdwg.mxu0
  %v903 = vadd.f32 %v832, %v900
  %v904 = vxor.u32 %v903, 2147483648
  %v905 = vmul.f32 %v904, 1.442695
  %v906 = vpow.pop %v905
  %v907 = vadd.f32 %v906, 1.0
  %v908 = vrcp.pop %v907
  %v909 = vmul.f32 1.0, %v908
  %v910 = vtanh.pop %v903
  %v911 = vsel %vm187, %v910, %v909
  %912 = vrot.lane.b32.xlu0 %v911, 96
  %v913 = vpop.permute.xlu0 %912
  %914 = vrot.lane.b32.xlu0 %v911, 64
  %v915 = vpop.permute.xlu0 %914
  %916 = vrot.lane.b32.xlu0 %v911, 32
  %v917 = vpop.permute.xlu0 %916
  %v918 = vmul.f32 %v913, %v828
  %v919 = vmul.f32 %v911, %v915
  %v920 = vadd.f32 %v918, %v919
  %v921 = vtanh.pop %v920
  %v922 = vmul.f32 %v917, %v921
  %v923 = vld [vmem:[%s4] sm:$0xff]
  %v924 = vld [vmem:[%s4 + $0x8] sm:$0xff]
  %v925 = vld [vmem:[%s4 + $0x10] sm:$0xff]
  %v926 = vld [vmem:[%s4 + $0x18] sm:$0xff]
  %v927 = vld [vmem:[%s4 + $0x20] sm:$0xff]
  %v928 = vld [vmem:[%s4 + $0x28] sm:$0xff]
  %v929 = vld [vmem:[%s4 + $0x30] sm:$0xff]
  %v930 = vld [vmem:[%s4 + $0x38] sm:$0xff]
  %v931 = vld [vmem:[%s4 + $0x40] sm:$0xff]
  %v932 = vld [vmem:[%s4 + $0x48] sm:$0xff]
  %v933 = vld [vmem:[%s4 + $0x50] sm:$0xff]
  %v934 = vld [vmem:[%s4 + $0x58] sm:$0xff]
  %v935 = vld [vmem:[%s4 + $0x60] sm:$0xff]
  %v936 = vld [vmem:[%s4 + $0x68] sm:$0xff]
  %v937 = vld [vmem:[%s4 + $0x70] sm:$0xff]
  %v938 = vld [vmem:[%s4 + $0x78] sm:$0xff]
  %v939 = vld [vmem:[%s5] sm:$0x1]
  %v941 = vlaneseq
  %v942 = vshrl.u32 %v941, 7
  %v943 = vsub.s32 0, %v942
  %v944 = vrot.slane %v939, %v943
  %946 = vmatprep.subr.mxu0 0.0
  %947 = vmatpush1.msra.mxu0 %v923
  %948 = vmatprep.subr.mxu0 0.0
  %949 = vmatpush1.msra.mxu0 %v924
  %950 = vmatprep.subr.mxu0 0.0
  %951 = vmatpush1.msra.mxu0 %v925
  %952 = vmatprep.subr.mxu0 0.0
  %953 = vmatpush1.msra.mxu0 %v926
  %954 = vmatprep.subr.mxu0 0.0
  %955 = vmatpush1.msra.mxu0 %v927
  %956 = vmatprep.subr.mxu0 0.0
  %957 = vmatpush1.msra.mxu0 %v928
  %958 = vmatprep.subr.mxu0 0.0
  %959 = vmatpush1.msra.mxu0 %v929
  %960 = vmatprep.subr.mxu0 0.0
  %961 = vmatpush1.msra.mxu0 %v930
  %962 = vmatprep.subr.mxu0 0.0
  %963 = vmatpush1.msra.mxu0 %v931
  %964 = vmatprep.subr.mxu0 0.0
  %965 = vmatpush1.msra.mxu0 %v932
  %966 = vmatprep.subr.mxu0 0.0
  %967 = vmatpush1.msra.mxu0 %v933
  %968 = vmatprep.subr.mxu0 0.0
  %969 = vmatpush1.msra.mxu0 %v934
  %970 = vmatprep.subr.mxu0 0.0
  %971 = vmatpush1.msra.mxu0 %v935
  %972 = vmatprep.subr.mxu0 0.0
  %973 = vmatpush1.msra.mxu0 %v936
  %974 = vmatprep.subr.mxu0 0.0
  %975 = vmatpush1.msra.mxu0 %v937
  %976 = vmatprep.subr.mxu0 0.0
  %977 = vmatpush1.msra.mxu0 %v938
  %978 = vmatprep.subr.mxu0 0.0
  %979 = vmatpush1.msra.mxu0 0.0
  %980 = vmatprep.subr.mxu0 0.0
  %981 = vmatpush1.msra.mxu0 0.0
  %982 = vmatprep.subr.mxu0 0.0
  %983 = vmatpush1.msra.mxu0 0.0
  %984 = vmatprep.subr.mxu0 0.0
  %985 = vmatpush1.msra.mxu0 0.0
  %986 = vmatprep.subr.mxu0 0.0
  %987 = vmatpush1.msra.mxu0 0.0
  %988 = vmatprep.subr.mxu0 0.0
  %989 = vmatpush1.msra.mxu0 0.0
  %990 = vmatprep.subr.mxu0 0.0
  %991 = vmatpush1.msra.mxu0 0.0
  %992 = vmatprep.subr.mxu0 0.0
  %993 = vmatpush1.msra.mxu0 0.0
  %994 = vmatprep.subr.mxu0 0.0
  %995 = vmatpush1.msra.mxu0 0.0
  %996 = vmatprep.subr.mxu0 0.0
  %997 = vmatpush1.msra.mxu0 0.0
  %998 = vmatprep.subr.mxu0 0.0
  %999 = vmatpush1.msra.mxu0 0.0
  %1000 = vmatprep.subr.mxu0 0.0
  %1001 = vmatpush1.msra.mxu0 0.0
  %1002 = vmatprep.subr.mxu0 0.0
  %1003 = vmatpush1.msra.mxu0 0.0
  %1004 = vmatprep.subr.mxu0 0.0
  %1005 = vmatpush1.msra.mxu0 0.0
  %1006 = vmatprep.subr.mxu0 0.0
  %1007 = vmatpush1.msra.mxu0 0.0
  %1008 = vmatprep.subr.mxu0 0.0
  %1009 = vmatpush1.msra.mxu0 0.0
  %1010 = vmatprep.mubr.f32.mxu0 0.0
  %1011 = vmatmul.mubr.f32.gmra.mrb[0].mxu0 %v922
  %v1012 = vpop.f32.mrb[0].mxu0
  %v1013 = vadd.f32 %v944, %v1012
  %v1014 = vpop.f32.mrb[0].mxu0
  %1015 = vdwg.mxu0
  %1016 = vst [vmem:[%s6] sm:$0xff] %v1013
  // Predicated region
  $region26: #{lstm_forward.1} parent=0 // pred_check
    _
  $region27: #{lstm_forward.1} parent=0 // pred_check_branch
    %1018 = sbr.rel (0) target = $region29
  $region28: #{lstm_forward.1} parent=0 // pred_region
    _
  $region29: #{lstm_forward.1} parent=0 // pred_fallthru
    _
  // Predicated region
  $region30: #{lstm_forward.1} parent=0 // pred_check
    _
  $region31: #{lstm_forward.1} parent=0 // pred_check_branch
    %1020 = sbr.rel (0) target = $region33
  $region32: #{lstm_forward.1} parent=0 // pred_region
    _
  $region33: #{lstm_forward.1} parent=0 // pred_fallthru
    _

</llo_original>
